<compile_context>
chip_gen: v7x
topology: tpu7x:2x2x1
jax: 0.10.0
libtpu: 0.0.40
codegen_flags: <defaults>
</compile_context>

<pallas_src>
import jax
import jax.numpy as jnp
from jax.experimental import pallas as pl
from jax.experimental.pallas import tpu as pltpu


def _re_mechanism_kernel(all_mem_ref, last_mem_ref,
                         ure_ref, wre_ref, vre_ref, wcre_ref,
                         out_ref):
    """One block of TB batch rows per grid step.

    all_mem_ref : [TB, S, H]   activations (f32 or bf16)
    last_mem_ref: [TB, 1, H]
    ure_ref     : [H, H]       pre-transposed to (in, out)
    wre_ref     : [H, H]       pre-transposed to (in, out)
    vre_ref     : [1, H]       f32
    wcre_ref    : [H, 2]       pre-transposed to (in, out)
    out_ref     : [TB, 2]      f32 probabilities
    """
    TB, S, H = all_mem_ref.shape

    all_mem = all_mem_ref[...]                         # [TB, S, H]
    last_mem = last_mem_ref[...].reshape(TB, H)        # [TB, H]
    ure_t = ure_ref[...]                               # [H, H]
    wre_t = wre_ref[...]                               # [H, H]
    vre = vre_ref[...].reshape(1, 1, H)                # [1, 1, H] f32
    wcre_t = wcre_ref[...].astype(jnp.float32)         # [H, 2]

    # Ure(all_memory): one big MXU matmul over all TB*S rows, f32 accumulate.
    all_u = jnp.dot(all_mem.reshape(TB * S, H), ure_t,
                    preferred_element_type=jnp.float32).reshape(TB, S, H)

    # Wre(last_memory): [TB, H] x [H, H] -> [TB, H]
    last_w = jnp.dot(last_mem, wre_t,
                     preferred_element_type=jnp.float32)

    # dropout = identity (eval mode); tanh kept in f32 (v5e EUP has no bf16).
    out_ere = jnp.tanh(all_u + last_w[:, None, :])     # [TB, S, H] f32

    # Vre scores: elementwise mul + lane(H)-axis reduce keeps S lane-dense.
    scores = jnp.sum(out_ere * vre, axis=-1)           # [TB, S] f32

    # softmax over the seq (lane) axis — exact divide for reference parity.
    m = jnp.max(scores, axis=-1, keepdims=True)
    e = jnp.exp(scores - m)
    alpha = e / jnp.sum(e, axis=-1, keepdims=True)     # [TB, S]

    # alpha-weighted sum of the ORIGINAL memory values over seq.
    output_cre = jnp.sum(alpha[:, :, None] * all_mem.astype(jnp.float32),
                         axis=1)                       # [TB, H] f32

    # Wcre: [TB, H] x [H, 2] -> [TB, 2]
    logits = jnp.dot(output_cre, wcre_t,
                     preferred_element_type=jnp.float32)

    # final softmax over the 2 classes (exact divide).
    m2 = jnp.max(logits, axis=-1, keepdims=True)
    e2 = jnp.exp(logits - m2)
    probs = e2 / jnp.sum(e2, axis=-1, keepdims=True)

    out_ref[...] = probs.astype(out_ref.dtype)


def _choose_block_batch(B, S):
    """Pick TB rows of the batch per grid step.

    Targets >= ~1024 (TB*S) matmul rows per block (tile-size sweep: >=512 rows
    already reaches ~85% of the HBM roofline).  When several blocks are needed
    TB is a multiple of 8 so the (TB, 2) output block satisfies the (8, 128)
    tiling rule; when the whole batch fits in one block we just take it
    (the tiny-shape regime is launch/DMA-overhead bound anyway).
    """
    target_rows = 1024
    tb = max(1, target_rows // max(S, 1))
    if tb >= B:
        return B                       # single block: block dims == full dims
    return max(8, (tb // 8) * 8)       # multiple blocks: TB must be 8-aligned


def repeat_explore_mechanism(all_memory, last_memory, params, *,
                             use_bf16=False, block_batch=None):
    """Pallas forward pass; grid over blocks of TB batch rows."""
    B, S, H = all_memory.shape
    in_dtype = jnp.bfloat16 if use_bf16 else jnp.float32
    itemsize = 2 if use_bf16 else 4

    if block_batch is None:
        TB = _choose_block_batch(B, S)
    else:
        TB = int(block_batch)
        if TB >= B:
            TB = B
        else:
            TB = max(8, (TB // 8) * 8)   # keep (TB, 2) output block legal

    B_pad = ((B + TB - 1) // TB) * TB
    nblocks = B_pad // TB

    am = all_memory.astype(in_dtype)
    lm = last_memory.reshape(B, 1, H).astype(in_dtype)
    if B_pad != B:
        am = jnp.pad(am, ((0, B_pad - B), (0, 0), (0, 0)))
        lm = jnp.pad(lm, ((0, B_pad - B), (0, 0), (0, 0)))

    # Pre-transpose Linear weights (PyTorch (out, in)) to (in, out) once,
    # host/XLA-side, so the kernel never contracts against a transposed RHS.
    ure_t = params['Ure'].T.astype(in_dtype)     # [H, H]
    wre_t = params['Wre'].T.astype(in_dtype)     # [H, H]
    vre = params['Vre'].astype(jnp.float32)      # [1, H] (used elementwise)
    wcre_t = params['Wcre'].T.astype(in_dtype)   # [H, 2]

    flops = 2 * B_pad * (S * H * H    # Ure
                         + H * H      # Wre
                         + S * H      # Vre scores
                         + S * H      # alpha-weighted sum
                         + 2 * H)     # Wcre
    transcendentals = B_pad * (S * H + S + 2)
    bytes_accessed = (itemsize * (B_pad * S * H + B_pad * H
                                  + 2 * H * H + 2 * H)
                      + 4 * (H + B_pad * 2))

    # Size scoped VMEM from the block: double-buffered activations + weights
    # plus the f32 intermediates, 2x headroom, clamped to 64 MiB (fits v7x).
    io_bytes = (2 * (TB * S * H + TB * H) * itemsize
                + 2 * (2 * H * H + 2 * H) * itemsize
                + 4 * H + 2 * TB * 2 * 4)
    interm_bytes = 3 * TB * S * H * 4
    vmem_limit = int(min(max(2 * (io_bytes + interm_bytes), 32 << 20), 64 << 20))

    out = pl.pallas_call(
        _re_mechanism_kernel,
        out_shape=jax.ShapeDtypeStruct((B_pad, 2), jnp.float32),
        grid=(nblocks,),
        in_specs=[
            pl.BlockSpec((TB, S, H), lambda b: (b, 0, 0)),   # all_memory
            pl.BlockSpec((TB, 1, H), lambda b: (b, 0, 0)),   # last_memory
            pl.BlockSpec((H, H), lambda b: (0, 0)),          # Ure^T
            pl.BlockSpec((H, H), lambda b: (0, 0)),          # Wre^T
            pl.BlockSpec((1, H), lambda b: (0, 0)),          # Vre
            pl.BlockSpec((H, 2), lambda b: (0, 0)),          # Wcre^T
        ],
        out_specs=pl.BlockSpec((TB, 2), lambda b: (b, 0)),
        compiler_params=pltpu.CompilerParams(
            dimension_semantics=("parallel",),
            vmem_limit_bytes=vmem_limit),
        cost_estimate=pl.CostEstimate(flops=flops,
                                      transcendentals=transcendentals,
                                      bytes_accessed=bytes_accessed),
    )(am, lm, ure_t, wre_t, vre, wcre_t)

    return out[:B]


def _reference(all_memory, last_memory, params):
    """Pure-JAX reference matching the PyTorch module (eval mode)."""
    all_u = jnp.einsum('bsh,oh->bso', all_memory, params['Ure'])
    last_w = jnp.einsum('bh,oh->bo', last_memory, params['Wre'])
    out_ere = jnp.tanh(all_u + last_w[:, None, :])
    scores = jnp.einsum('bsh,oh->bso', out_ere, params['Vre'])[..., 0]  # [B,S]
    alpha = jax.nn.softmax(scores, axis=1)
    output_cre = jnp.einsum('bs,bsh->bh', alpha, all_memory)
    logits = jnp.einsum('bh,oh->bo', output_cre, params['Wcre'])
    return jax.nn.softmax(logits, axis=-1)


def _xavier_normal(key, out_f, in_f):
    # matches torch.nn.init.xavier_normal_ std = sqrt(2 / (fan_in + fan_out))
    std = (2.0 / (in_f + out_f)) ** 0.5
    return std * jax.random.normal(key, (out_f, in_f), dtype=jnp.float32)


if __name__ == "__main__":
    # small shapes consistent with the module: batch=2, seq_len=8, hidden=32
    B, S, H = 2, 8, 32

    root = jax.random.PRNGKey(0)
    k_am, k_lm, k_wre, k_ure, k_vre, k_wcre, k_am2, k_lm2 = jax.random.split(root, 8)

    all_memory = jax.random.normal(k_am, (B, S, H), dtype=jnp.float32)
    last_memory = jax.random.normal(k_lm, (B, H), dtype=jnp.float32)

    # deterministic parameter init (nn.Linear weights, shape (out, in), no bias)
    params = {
        'Wre':  _xavier_normal(k_wre,  H, H),   # hidden -> hidden
        'Ure':  _xavier_normal(k_ure,  H, H),   # hidden -> hidden
        'Vre':  _xavier_normal(k_vre,  1, H),   # hidden -> 1
        'Wcre': _xavier_normal(k_wcre, 2, H),   # hidden -> 2
    }

    ref = _reference(all_memory, last_memory, params)

    # 1) f32 path, whole batch in one block (tiny-shape regime).
    out = repeat_explore_mechanism(all_memory, last_memory, params,
                                   use_bf16=False)
    out = jax.block_until_ready(out)
    assert out.shape == (B, 2)
    assert jnp.allclose(jnp.sum(out, axis=-1), 1.0, atol=1e-5)
    assert jnp.allclose(out, ref, atol=1e-4, rtol=1e-4)

    # 2) bf16 matmul operands (v6e/v7x path) — transcendentals stay f32.
    out_bf16 = repeat_explore_mechanism(all_memory, last_memory, params,
                                        use_bf16=True)
    out_bf16 = jax.block_until_ready(out_bf16)
    assert jnp.allclose(jnp.sum(out_bf16, axis=-1), 1.0, atol=1e-5)
    assert jnp.allclose(out_bf16, ref, atol=3e-2, rtol=3e-2)

    # 3) multi-block / padded-batch path (B not a multiple of TB).
    B2 = 20
    all_memory2 = jax.random.normal(k_am2, (B2, S, H), dtype=jnp.float32)
    last_memory2 = jax.random.normal(k_lm2, (B2, H), dtype=jnp.float32)
    out2 = repeat_explore_mechanism(all_memory2, last_memory2, params,
                                    use_bf16=False, block_batch=8)
    out2 = jax.block_until_ready(out2)
    ref2 = _reference(all_memory2, last_memory2, params)
    assert out2.shape == (B2, 2)
    assert jnp.allclose(out2, ref2, atol=1e-4, rtol=1e-4)

    print("KERNEL_OK")
</pallas_src>

<mosaic_0001>
module attributes {stable_mosaic.version = 11 : i64} {
  func.func @_re_mechanism_kernel(%arg0: i32, %arg1: memref<2x8x32xf32, #tpu.memory_space<vmem>>, %arg2: memref<2x1x32xf32, #tpu.memory_space<vmem>>, %arg3: memref<32x32xf32, #tpu.memory_space<vmem>>, %arg4: memref<32x32xf32, #tpu.memory_space<vmem>>, %arg5: memref<1x32xf32, #tpu.memory_space<vmem>>, %arg6: memref<32x2xf32, #tpu.memory_space<vmem>>, %arg7: memref<2x2xf32, #tpu.memory_space<vmem>>) attributes {dimension_semantics = [#tpu.dimension_semantics<parallel>], iteration_bounds = array<i64: 1>, scalar_prefetch = 0 : i64, scratch_operands = 0 : i64, tpu.core_type = #tpu.core_type<tc>, window_params = [{transform_indices = @transform_0, window_bounds = array<i64: 2, 8, 32>}, {transform_indices = @transform_1, window_bounds = array<i64: 2, 1, 32>}, {pipeline_mode = #tpu.pipeline_mode<synchronous>, transform_indices = @transform_2, window_bounds = array<i64: 32, 32>}, {pipeline_mode = #tpu.pipeline_mode<synchronous>, transform_indices = @transform_3, window_bounds = array<i64: 32, 32>}, {pipeline_mode = #tpu.pipeline_mode<synchronous>, transform_indices = @transform_4, window_bounds = array<i64: 1, 32>}, {pipeline_mode = #tpu.pipeline_mode<synchronous>, transform_indices = @transform_5, window_bounds = array<i64: 32, 2>}, {transform_indices = @transform_6, window_bounds = array<i64: 2, 2>}]} {
    %c0 = arith.constant 0 : index
    %c0_0 = arith.constant 0 : index
    %c0_1 = arith.constant 0 : index
    %0 = vector.load %arg1[%c0, %c0_0, %c0_1] : memref<2x8x32xf32, #tpu.memory_space<vmem>>, vector<2x8x32xf32>
    %c0_2 = arith.constant 0 : index
    %c0_3 = arith.constant 0 : index
    %c0_4 = arith.constant 0 : index
    %1 = vector.load %arg2[%c0_2, %c0_3, %c0_4] : memref<2x1x32xf32, #tpu.memory_space<vmem>>, vector<2x1x32xf32>
    %2 = vector.shape_cast %1 : vector<2x1x32xf32> to vector<2x32xf32>
    %c0_5 = arith.constant 0 : index
    %c0_6 = arith.constant 0 : index
    %3 = vector.load %arg3[%c0_5, %c0_6] : memref<32x32xf32, #tpu.memory_space<vmem>>, vector<32x32xf32>
    %c0_7 = arith.constant 0 : index
    %c0_8 = arith.constant 0 : index
    %4 = vector.load %arg4[%c0_7, %c0_8] : memref<32x32xf32, #tpu.memory_space<vmem>>, vector<32x32xf32>
    %c0_9 = arith.constant 0 : index
    %c0_10 = arith.constant 0 : index
    %5 = vector.load %arg5[%c0_9, %c0_10] : memref<1x32xf32, #tpu.memory_space<vmem>>, vector<1x32xf32>
    %6 = vector.shape_cast %5 : vector<1x32xf32> to vector<1x1x32xf32>
    %c0_11 = arith.constant 0 : index
    %c0_12 = arith.constant 0 : index
    %7 = vector.load %arg6[%c0_11, %c0_12] : memref<32x2xf32, #tpu.memory_space<vmem>>, vector<32x2xf32>
    %8 = vector.shape_cast %0 : vector<2x8x32xf32> to vector<16x32xf32>
    %cst = arith.constant dense<0.000000e+00> : vector<16x32xf32>
    %9 = tpu.matmul %8, %3, %cst {dimension_numbers = #tpu.dot_dimension_numbers<[1], [0], [0], [1], [0, 0, 1, 1], [], []>} : vector<16x32xf32>, vector<32x32xf32>, vector<16x32xf32> -> vector<16x32xf32>
    %10 = vector.shape_cast %9 : vector<16x32xf32> to vector<2x8x32xf32>
    %cst_13 = arith.constant dense<0.000000e+00> : vector<2x32xf32>
    %11 = tpu.matmul %2, %4, %cst_13 {dimension_numbers = #tpu.dot_dimension_numbers<[1], [0], [0], [1], [0, 0, 1, 1], [], []>} : vector<2x32xf32>, vector<32x32xf32>, vector<2x32xf32> -> vector<2x32xf32>
    %12 = vector.shape_cast %11 : vector<2x32xf32> to vector<2x1x32xf32>
    %13 = vector.broadcast %12 : vector<2x1x32xf32> to vector<2x8x32xf32>
    %14 = arith.addf %10, %13 : vector<2x8x32xf32>
    %15 = math.tanh %14 : vector<2x8x32xf32>
    %16 = vector.broadcast %6 : vector<1x1x32xf32> to vector<2x8x32xf32>
    %17 = arith.mulf %15, %16 : vector<2x8x32xf32>
    %cst_14 = arith.constant dense<0.000000e+00> : vector<2x8xf32>
    %18 = vector.multi_reduction <add>, %17, %cst_14 [2] : vector<2x8x32xf32> to vector<2x8xf32>
    %cst_15 = arith.constant dense<0xFF800000> : vector<2xf32>
    %19 = vector.multi_reduction <maximumf>, %18, %cst_15 [1] : vector<2x8xf32> to vector<2xf32>
    %20 = vector.shape_cast %19 : vector<2xf32> to vector<2x1xf32>
    %21 = vector.broadcast %20 : vector<2x1xf32> to vector<2x8xf32>
    %22 = arith.subf %18, %21 : vector<2x8xf32>
    %23 = math.exp %22 : vector<2x8xf32>
    %cst_16 = arith.constant dense<0.000000e+00> : vector<2xf32>
    %24 = vector.multi_reduction <add>, %23, %cst_16 [1] : vector<2x8xf32> to vector<2xf32>
    %25 = vector.shape_cast %24 : vector<2xf32> to vector<2x1xf32>
    %26 = vector.broadcast %25 : vector<2x1xf32> to vector<2x8xf32>
    %27 = arith.divf %23, %26 : vector<2x8xf32>
    %28 = vector.shape_cast %27 : vector<2x8xf32> to vector<2x8x1xf32>
    %29 = vector.broadcast %28 : vector<2x8x1xf32> to vector<2x8x32xf32>
    %30 = arith.mulf %29, %0 : vector<2x8x32xf32>
    %cst_17 = arith.constant dense<0.000000e+00> : vector<2x32xf32>
    %31 = vector.multi_reduction <add>, %30, %cst_17 [1] : vector<2x8x32xf32> to vector<2x32xf32>
    %cst_18 = arith.constant dense<0.000000e+00> : vector<2x2xf32>
    %32 = tpu.matmul %31, %7, %cst_18 {dimension_numbers = #tpu.dot_dimension_numbers<[1], [0], [0], [1], [0, 0, 1, 1], [], []>} : vector<2x32xf32>, vector<32x2xf32>, vector<2x2xf32> -> vector<2x2xf32>
    %cst_19 = arith.constant dense<0xFF800000> : vector<2xf32>
    %33 = vector.multi_reduction <maximumf>, %32, %cst_19 [1] : vector<2x2xf32> to vector<2xf32>
    %34 = vector.shape_cast %33 : vector<2xf32> to vector<2x1xf32>
    %35 = vector.broadcast %34 : vector<2x1xf32> to vector<2x2xf32>
    %36 = arith.subf %32, %35 : vector<2x2xf32>
    %37 = math.exp %36 : vector<2x2xf32>
    %cst_20 = arith.constant dense<0.000000e+00> : vector<2xf32>
    %38 = vector.multi_reduction <add>, %37, %cst_20 [1] : vector<2x2xf32> to vector<2xf32>
    %39 = vector.shape_cast %38 : vector<2xf32> to vector<2x1xf32>
    %40 = vector.broadcast %39 : vector<2x1xf32> to vector<2x2xf32>
    %41 = arith.divf %37, %40 : vector<2x2xf32>
    %c0_21 = arith.constant 0 : index
    %c0_22 = arith.constant 0 : index
    %42 = vector.load %arg7[%c0_21, %c0_22] : memref<2x2xf32, #tpu.memory_space<vmem>>, vector<2x2xf32>
    tpu.vector_store %arg7[%c0_21, %c0_22], %41 {strides = array<i32>} : memref<2x2xf32, #tpu.memory_space<vmem>>, vector<2x2xf32>,
    return
  }
  func.func @transform_0(%arg0: i32) -> (i32, i32, i32) {
    %c0_i32 = arith.constant 0 : i32
    %c0_i32_0 = arith.constant 0 : i32
    %c0_i32_1 = arith.constant 0 : i32
    return %arg0, %c0_i32, %c0_i32_0 : i32, i32, i32
  }
  func.func @transform_1(%arg0: i32) -> (i32, i32, i32) {
    %c0_i32 = arith.constant 0 : i32
    %c0_i32_0 = arith.constant 0 : i32
    %c0_i32_1 = arith.constant 0 : i32
    return %arg0, %c0_i32, %c0_i32_0 : i32, i32, i32
  }
  func.func @transform_2(%arg0: i32) -> (i32, i32) {
    %c0_i32 = arith.constant 0 : i32
    %c0_i32_0 = arith.constant 0 : i32
    %c0_i32_1 = arith.constant 0 : i32
    return %c0_i32, %c0_i32_0 : i32, i32
  }
  func.func @transform_3(%arg0: i32) -> (i32, i32) {
    %c0_i32 = arith.constant 0 : i32
    %c0_i32_0 = arith.constant 0 : i32
    %c0_i32_1 = arith.constant 0 : i32
    return %c0_i32, %c0_i32_0 : i32, i32
  }
  func.func @transform_4(%arg0: i32) -> (i32, i32) {
    %c0_i32 = arith.constant 0 : i32
    %c0_i32_0 = arith.constant 0 : i32
    %c0_i32_1 = arith.constant 0 : i32
    return %c0_i32, %c0_i32_0 : i32, i32
  }
  func.func @transform_5(%arg0: i32) -> (i32, i32) {
    %c0_i32 = arith.constant 0 : i32
    %c0_i32_0 = arith.constant 0 : i32
    %c0_i32_1 = arith.constant 0 : i32
    return %c0_i32, %c0_i32_0 : i32, i32
  }
  func.func @transform_6(%arg0: i32) -> (i32, i32) {
    %c0_i32 = arith.constant 0 : i32
    %c0_i32_0 = arith.constant 0 : i32
    return %arg0, %c0_i32 : i32, i32
  }
}

</mosaic_0001>

<llo_original>
// kernel: tpu_custom_call.1
$region0: #{tpu_custom_call.1}
  #allocation0 [shape = 'u32[]', space=smem, size = 0x4, offset = 0x4, fixed_abs, tag = 'smem constant byte address 0x4 - core index']
  #allocation1 [shape = 'u32[144,128]{1,0:T(1,128)}', space=vmem, size = 0x12000, scoped, tag = 'internal scratch']
  %s0 = inlined_call_operand.hbm [shape: f32[2,8,32], index: 0, kind: input, shape index: {}]
  %s1 = inlined_call_operand.vmem [shape: f32[2,1,32], index: 1, kind: input, shape index: {}]
  %s2 = inlined_call_operand.vmem [shape: f32[32,32], index: 2, kind: input, shape index: {}]
  %s3 = inlined_call_operand.hbm [shape: f32[32,32], index: 3, kind: input, shape index: {}]
  %s4 = inlined_call_operand.vmem [shape: f32[1,32], index: 4, kind: input, shape index: {}]
  %s5 = inlined_call_operand.vmem [shape: f32[32,2], index: 5, kind: input, shape index: {}]
  %s6 = inlined_call_operand.hbm [shape: f32[2,2], index: 6, kind: output, shape index: {}]
  %s7 = sld [smem:[#allocation0]]
  $region42: #{tpu_custom_call.1} parent=0
    _
  %s9 = ssub.s32 1, %s7
  %s10 = scalar_select 0, %s9, %s7
  $region1: #{tpu_custom_call.1} parent=0
    #allocation2 [shape = 'u8[8192]{0}', space=vmem, size = 0x2000, scoped, tag = 'input window, operand 0, single buffered']
    #allocation3 [shape = 's32[1]{0}', space=sflag, size = 0x4, scoped, tag = 'scoped memory for tpu_custom_call.1']
    #allocation4 [shape = 's32[1]{0}', space=sflag, size = 0x4, scoped, tag = 'scoped memory for tpu_custom_call.1']
    #allocation5 [shape = 'u8[16384]{0}', space=vmem, size = 0x4000, scoped, tag = 'input window, operand 3, single buffered']
    #allocation6 [shape = 's32[1]{0}', space=sflag, size = 0x4, scoped, tag = 'scoped memory for tpu_custom_call.1']
    #allocation7 [shape = 'u8[1024]{0}', space=vmem, size = 0x400, scoped, tag = 'output window, operand 0, single buffered']
    %11 = vsyncpa [#allocation3], 0
    %12 = vsyncpa [#allocation6], 0
    %13 = vsyncpa [#allocation4], 0
    // Predicated region
    $region2: #{tpu_custom_call.1} parent=1 // pred_check
      _
    $region3: #{tpu_custom_call.1} parent=1 // pred_check_branch
      %15 = sbr.rel (0) target = $region5
    $region4: #{tpu_custom_call.1} parent=1 // pred_region
      %s17 = ssub.s32 256, 256
      %18 = vsyncadd [#allocation3], %s17
      %s19 = sshll.u32 [#allocation2], 4
      %s20 = int_to_ptr.vmem [resolvable:$true] %s19
      %25 = dma.hbm_to_vmem [thread:$0]  %s0, 256, %s20, [#allocation3], 128, 128, 8
    $region5: #{tpu_custom_call.1} parent=1 // pred_fallthru
      _
    // Predicated region
    $region6: #{tpu_custom_call.1} parent=1 // pred_check
      _
    $region7: #{tpu_custom_call.1} parent=1 // pred_check_branch
      %27 = sbr.rel (0) target = $region9
    $region8: #{tpu_custom_call.1} parent=1 // pred_region
      _
    $region9: #{tpu_custom_call.1} parent=1 // pred_fallthru
      _
    // Predicated region
    $region10: #{tpu_custom_call.1} parent=1 // pred_check
      _
    $region11: #{tpu_custom_call.1} parent=1 // pred_check_branch
      %29 = sbr.rel (0) target = $region13
    $region12: #{tpu_custom_call.1} parent=1 // pred_region
      _
    $region13: #{tpu_custom_call.1} parent=1 // pred_fallthru
      _
    // Predicated region
    $region14: #{tpu_custom_call.1} parent=1 // pred_check
      _
    $region15: #{tpu_custom_call.1} parent=1 // pred_check_branch
      %31 = sbr.rel (0) target = $region17
    $region16: #{tpu_custom_call.1} parent=1 // pred_region
      %s33 = ssub.s32 512, 512
      %34 = vsyncadd [#allocation6], %s33
      %s35 = sshll.u32 [#allocation5], 4
      %s36 = int_to_ptr.vmem [resolvable:$true] %s35
      %41 = dma.hbm_to_vmem [thread:$0]  %s3, 512, %s36, [#allocation6], 128, 128, 8
    $region17: #{tpu_custom_call.1} parent=1 // pred_fallthru
      _
    // Predicated region
    $region18: #{tpu_custom_call.1} parent=1 // pred_check
      _
    $region19: #{tpu_custom_call.1} parent=1 // pred_check_branch
      %43 = sbr.rel (0) target = $region21
    $region20: #{tpu_custom_call.1} parent=1 // pred_region
      _
    $region21: #{tpu_custom_call.1} parent=1 // pred_fallthru
      _
    // Predicated region
    $region22: #{tpu_custom_call.1} parent=1 // pred_check
      _
    $region23: #{tpu_custom_call.1} parent=1 // pred_check_branch
      %45 = sbr.rel (0) target = $region25
    $region24: #{tpu_custom_call.1} parent=1 // pred_region
      _
    $region25: #{tpu_custom_call.1} parent=1 // pred_fallthru
      _
    // Predicated region
    $region26: #{tpu_custom_call.1} parent=1 // pred_check
      _
    $region27: #{tpu_custom_call.1} parent=1 // pred_check_branch
      %47 = sbr.rel (0) target = $region29
    $region28: #{tpu_custom_call.1} parent=1 // pred_region
      %48 = dma.done [#allocation3], 256
    $region29: #{tpu_custom_call.1} parent=1 // pred_fallthru
      _
    // Predicated region
    $region30: #{tpu_custom_call.1} parent=1 // pred_check
      _
    $region31: #{tpu_custom_call.1} parent=1 // pred_check_branch
      %50 = sbr.rel (0) target = $region33
    $region32: #{tpu_custom_call.1} parent=1 // pred_region
      %51 = dma.done [#allocation6], 512
    $region33: #{tpu_custom_call.1} parent=1 // pred_fallthru
      _
    %v52 = vld [vmem:[#allocation2] sm:$0xff]
    %v53 = vld [vmem:[#allocation2 + $0x8] sm:$0xff]
    %v54 = vld [vmem:[%s1] sm:$0x1]
    %v55 = vld [vmem:[%s1 + $0x1] sm:$0x1]
    %v56 = vld [vmem:[%s2] sm:$0xff]
    %v57 = vld [vmem:[%s2 + $0x8] sm:$0xff]
    %v58 = vld [vmem:[%s2 + $0x10] sm:$0xff]
    %v59 = vld [vmem:[%s2 + $0x18] sm:$0xff]
    %v60 = vld [vmem:[#allocation5] sm:$0xff]
    %v61 = vld [vmem:[#allocation5 + $0x8] sm:$0xff]
    %v62 = vld [vmem:[#allocation5 + $0x10] sm:$0xff]
    %v63 = vld [vmem:[#allocation5 + $0x18] sm:$0xff]
    %v64 = vld [vmem:[%s4] sm:$0x1]
    %v65 = vld [vmem:[%s5] sm:$0xff]
    %v66 = vld [vmem:[%s5 + $0x8] sm:$0xff]
    %v67 = vld [vmem:[%s5 + $0x10] sm:$0xff]
    %v68 = vld [vmem:[%s5 + $0x18] sm:$0xff]
    %vm69 = vcmask 261120
    %v71 = vsel %vm69, %v52, 0
    %v74 = vsel %vm69, %v53, 0
    %76 = vmatprep.subr.mxu0 0.0
    %77 = vmatpush1.msra.mxu0 %v56
    %78 = vmatprep.subr.mxu0 0.0
    %79 = vmatpush1.msra.mxu0 %v57
    %80 = vmatprep.subr.mxu0 0.0
    %81 = vmatpush1.msra.mxu0 %v58
    %82 = vmatprep.subr.mxu0 0.0
    %83 = vmatpush1.msra.mxu0 %v59
    %84 = vmatprep.subr.mxu0 0.0
    %85 = vmatpush1.msra.mxu0 0.0
    %86 = vmatprep.subr.mxu0 0.0
    %87 = vmatpush1.msra.mxu0 0.0
    %88 = vmatprep.subr.mxu0 0.0
    %89 = vmatpush1.msra.mxu0 0.0
    %90 = vmatprep.subr.mxu0 0.0
    %91 = vmatpush1.msra.mxu0 0.0
    %92 = vmatprep.subr.mxu0 0.0
    %93 = vmatpush1.msra.mxu0 0.0
    %94 = vmatprep.subr.mxu0 0.0
    %95 = vmatpush1.msra.mxu0 0.0
    %96 = vmatprep.subr.mxu0 0.0
    %97 = vmatpush1.msra.mxu0 0.0
    %98 = vmatprep.subr.mxu0 0.0
    %99 = vmatpush1.msra.mxu0 0.0
    %100 = vmatprep.subr.mxu0 0.0
    %101 = vmatpush1.msra.mxu0 0.0
    %102 = vmatprep.subr.mxu0 0.0
    %103 = vmatpush1.msra.mxu0 0.0
    %104 = vmatprep.subr.mxu0 0.0
    %105 = vmatpush1.msra.mxu0 0.0
    %106 = vmatprep.subr.mxu0 0.0
    %107 = vmatpush1.msra.mxu0 0.0
    %108 = vmatprep.subr.mxu0 0.0
    %109 = vmatpush1.msra.mxu0 0.0
    %110 = vmatprep.subr.mxu0 0.0
    %111 = vmatpush1.msra.mxu0 0.0
    %112 = vmatprep.subr.mxu0 0.0
    %113 = vmatpush1.msra.mxu0 0.0
    %114 = vmatprep.subr.mxu0 0.0
    %115 = vmatpush1.msra.mxu0 0.0
    %116 = vmatprep.subr.mxu0 0.0
    %117 = vmatpush1.msra.mxu0 0.0
    %118 = vmatprep.subr.mxu0 0.0
    %119 = vmatpush1.msra.mxu0 0.0
    %120 = vmatprep.subr.mxu0 0.0
    %121 = vmatpush1.msra.mxu0 0.0
    %122 = vmatprep.subr.mxu0 0.0
    %123 = vmatpush1.msra.mxu0 0.0
    %124 = vmatprep.subr.mxu0 0.0
    %125 = vmatpush1.msra.mxu0 0.0
    %126 = vmatprep.subr.mxu0 0.0
    %127 = vmatpush1.msra.mxu0 0.0
    %128 = vmatprep.subr.mxu0 0.0
    %129 = vmatpush1.msra.mxu0 0.0
    %130 = vmatprep.subr.mxu0 0.0
    %131 = vmatpush1.msra.mxu0 0.0
    %132 = vmatprep.subr.mxu0 0.0
    %133 = vmatpush1.msra.mxu0 0.0
    %134 = vmatprep.subr.mxu0 0.0
    %135 = vmatpush1.msra.mxu0 0.0
    %136 = vmatprep.subr.mxu0 0.0
    %137 = vmatpush1.msra.mxu0 0.0
    %138 = vmatprep.subr.mxu0 0.0
    %139 = vmatpush1.msra.mxu0 0.0
    %140 = vmatprep.mubr.f32.mxu0 0.0
    %141 = vmatmul.mubr.f32.gmra.mrb[0].mxu0 %v71
    %v142 = vpop.f32.mrb[0].mxu0
    %v143 = vadd.f32 0.0, %v142
    %v144 = vpop.f32.mrb[0].mxu0
    %145 = vmatprep.mubr.f32.mxu0 0.0
    %146 = vmatmul.mubr.f32.gmra.mrb[0].mxu0 %v74
    %v147 = vpop.f32.mrb[0].mxu0
    %v148 = vadd.f32 0.0, %v147
    %v149 = vpop.f32.mrb[0].mxu0
    %150 = vdwg.mxu0
    %v153 = vcombine.low %v54, %v55
    %v155 = vunpack.c.l.s4 1966171168
    %v156 = vunpack.c.0.s8 %v155
    %v157 = vlaneseq
    %v158 = vshrl.u32 %v157, 7
    %v159 = vsub.s32 %v156, %v158
    %v160 = vrot.slane %v153, %v159
    %v162 = vunpack.c.l.s4 1966171168
    %v163 = vunpack.c.0.s8 %v162
    %v164 = vlaneseq
    %v165 = vshrl.u32 %v164, 7
    %v166 = vsub.s32 %v163, %v165
    %v167 = vrot.slane %v160, %v166
    %v168 = vsel %vm69, %v167, 0
    %170 = vmatprep.subr.mxu0 0.0
    %171 = vmatpush1.msra.mxu0 %v60
    %172 = vmatprep.subr.mxu0 0.0
    %173 = vmatpush1.msra.mxu0 %v61
    %174 = vmatprep.subr.mxu0 0.0
    %175 = vmatpush1.msra.mxu0 %v62
    %176 = vmatprep.subr.mxu0 0.0
    %177 = vmatpush1.msra.mxu0 %v63
    %178 = vmatprep.subr.mxu0 0.0
    %179 = vmatpush1.msra.mxu0 0.0
    %180 = vmatprep.subr.mxu0 0.0
    %181 = vmatpush1.msra.mxu0 0.0
    %182 = vmatprep.subr.mxu0 0.0
    %183 = vmatpush1.msra.mxu0 0.0
    %184 = vmatprep.subr.mxu0 0.0
    %185 = vmatpush1.msra.mxu0 0.0
    %186 = vmatprep.subr.mxu0 0.0
    %187 = vmatpush1.msra.mxu0 0.0
    %188 = vmatprep.subr.mxu0 0.0
    %189 = vmatpush1.msra.mxu0 0.0
    %190 = vmatprep.subr.mxu0 0.0
    %191 = vmatpush1.msra.mxu0 0.0
    %192 = vmatprep.subr.mxu0 0.0
    %193 = vmatpush1.msra.mxu0 0.0
    %194 = vmatprep.subr.mxu0 0.0
    %195 = vmatpush1.msra.mxu0 0.0
    %196 = vmatprep.subr.mxu0 0.0
    %197 = vmatpush1.msra.mxu0 0.0
    %198 = vmatprep.subr.mxu0 0.0
    %199 = vmatpush1.msra.mxu0 0.0
    %200 = vmatprep.subr.mxu0 0.0
    %201 = vmatpush1.msra.mxu0 0.0
    %202 = vmatprep.subr.mxu0 0.0
    %203 = vmatpush1.msra.mxu0 0.0
    %204 = vmatprep.subr.mxu0 0.0
    %205 = vmatpush1.msra.mxu0 0.0
    %206 = vmatprep.subr.mxu0 0.0
    %207 = vmatpush1.msra.mxu0 0.0
    %208 = vmatprep.subr.mxu0 0.0
    %209 = vmatpush1.msra.mxu0 0.0
    %210 = vmatprep.subr.mxu0 0.0
    %211 = vmatpush1.msra.mxu0 0.0
    %212 = vmatprep.subr.mxu0 0.0
    %213 = vmatpush1.msra.mxu0 0.0
    %214 = vmatprep.subr.mxu0 0.0
    %215 = vmatpush1.msra.mxu0 0.0
    %216 = vmatprep.subr.mxu0 0.0
    %217 = vmatpush1.msra.mxu0 0.0
    %218 = vmatprep.subr.mxu0 0.0
    %219 = vmatpush1.msra.mxu0 0.0
    %220 = vmatprep.subr.mxu0 0.0
    %221 = vmatpush1.msra.mxu0 0.0
    %222 = vmatprep.subr.mxu0 0.0
    %223 = vmatpush1.msra.mxu0 0.0
    %224 = vmatprep.subr.mxu0 0.0
    %225 = vmatpush1.msra.mxu0 0.0
    %226 = vmatprep.subr.mxu0 0.0
    %227 = vmatpush1.msra.mxu0 0.0
    %228 = vmatprep.subr.mxu0 0.0
    %229 = vmatpush1.msra.mxu0 0.0
    %230 = vmatprep.subr.mxu0 0.0
    %231 = vmatpush1.msra.mxu0 0.0
    %232 = vmatprep.subr.mxu0 0.0
    %233 = vmatpush1.msra.mxu0 0.0
    %234 = vmatprep.mubr.f32.mxu0 0.0
    %235 = vmatmul.mubr.f32.gmra.mrb[0].mxu0 %v168
    %v236 = vpop.f32.mrb[0].mxu0
    %v237 = vadd.f32 0.0, %v236
    %v238 = vpop.f32.mrb[0].mxu0
    %239 = vdwg.mxu0
    %v242 = vunpack.c.l.s4 1966171168
    %v243 = vunpack.c.0.s8 %v242
    %v244 = vlaneseq
    %v245 = vshrl.u32 %v244, 7
    %v246 = vsub.s32 %v243, %v245
    %v247 = vrot.slane %v237, %v246
    %v248 = vcombine.high %v247, %v247
    %v250 = vunpack.c.l.s4 1966171168
    %v251 = vunpack.c.0.s8 %v250
    %v252 = vlaneseq
    %v253 = vshrl.u32 %v252, 7
    %v254 = vsub.s32 %v251, %v253
    %v255 = vrot.slane %v247, %v254
    %v257 = vunpack.c.l.s4 1966171168
    %v258 = vunpack.c.0.s8 %v257
    %v259 = vlaneseq
    %v260 = vshrl.u32 %v259, 7
    %v261 = vsub.s32 %v258, %v260
    %v262 = vrot.slane %v248, %v261
    %v263 = vlaneseq
    %v264 = vshrl.u32 %v263, 7
    %v265 = vsub.s32 0, %v264
    %v266 = vrot.slane %v255, %v265
    %v267 = vlaneseq
    %v268 = vshrl.u32 %v267, 7
    %v269 = vsub.s32 0, %v268
    %v270 = vrot.slane %v262, %v269
    %v273 = vadd.f32 %v143, %v266
    %v274 = vadd.f32 %v148, %v270
    %v275 = vtanh.pop %v273
    %v276 = vtanh.pop %v274
    %v278 = vlaneseq
    %v279 = vshrl.u32 %v278, 7
    %v280 = vsub.s32 0, %v279
    %v281 = vrot.slane %v64, %v280
    %v283 = vmul.f32 %v275, %v281
    %v284 = vmul.f32 %v276, %v281
    %v285 = vsel %vm69, %v283, 0.0
    %286 = vadd.xlane.f32.xlu0 %v285
    %v287 = vpop.xlane.xlu0 %286
    %v288 = vsel %vm69, %v284, 0.0
    %289 = vadd.xlane.f32.xlu0 %v288
    %v290 = vpop.xlane.xlu0 %289
    %v293 = vlaneseq
    %v294 = vand.u32 %v293, 127
    %v295 = vlaneseq
    %v296 = vshrl.u32 %v295, 7
    %v297 = vsub.s32 %v294, %v296
    %v298 = vrot.slane %v287, %v297
    %v299 = vlaneseq
    %v300 = vshrl.u32 %v299, 7
    %v301 = vsub.s32 %v294, %v300
    %v302 = vrot.slane %v290, %v301
    %vm303 = vcmask 1041409
    %v304 = vsel %vm303, %v302, %v298
    %vm306 = vcmask 58368
    %v307 = vsel %vm306, %v304, -inf
    %308 = vmax.xlane.f32.xlu0 %v307
    %v309 = vpop.xlane.xlu0 %308
    %v311 = vlaneseq
    %v312 = vshrl.u32 %v311, 7
    %v313 = vsub.s32 0, %v312
    %v314 = vrot.slane %v309, %v313
    %v315 = vlaneseq
    %v316 = vshrl.u32 %v315, 7
    %v317 = vsub.s32 1, %v316
    %v318 = vrot.slane %v309, %v317
    %v321 = vsub.f32 %v287, %v314
    %v322 = vsub.f32 %v290, %v318
    %v323 = vmul.f32 %v321, 1.442695
    %v324 = vpow.pop %v323
    %v325 = vmul.f32 %v322, 1.442695
    %v326 = vpow.pop %v325
    %329 = vset.pattern.permute.xlu0 0
    %330 = vperm.xlu0 %329, %v324
    %v331 = vpop.permute.xlu0 %330
    %332 = vset.pattern.permute.xlu0 0
    %333 = vperm.xlu0 %332, %v326
    %v334 = vpop.permute.xlu0 %333
    %v335 = vlaneseq
    %v336 = vshrl.u32 %v335, 7
    %v337 = vsub.s32 %v294, %v336
    %v338 = vrot.slane %v331, %v337
    %v339 = vlaneseq
    %v340 = vshrl.u32 %v339, 7
    %v341 = vsub.s32 %v294, %v340
    %v342 = vrot.slane %v334, %v341
    %v343 = vsel %vm303, %v342, %v338
    %v345 = vsel %vm306, %v343, 0.0
    %346 = vadd.xlane.f32.xlu0 %v345
    %v347 = vpop.xlane.xlu0 %346
    %v349 = vlaneseq
    %v350 = vshrl.u32 %v349, 7
    %v351 = vsub.s32 0, %v350
    %v352 = vrot.slane %v347, %v351
    %v353 = vlaneseq
    %v354 = vshrl.u32 %v353, 7
    %v355 = vsub.s32 1, %v354
    %v356 = vrot.slane %v347, %v355
    %v359 = vrcp.pop %v352
    %v360 = vmul.f32 %v324, %v359
    %v361 = vrcp.pop %v356
    %v362 = vmul.f32 %v326, %v361
    %364 = vset.pattern.permute.xlu0 0
    %365 = vperm.xlu0 %364, %v360
    %v366 = vpop.permute.xlu0 %365
    %369 = vset.pattern.permute.xlu0 0
    %370 = vperm.xlu0 %369, %v362
    %v371 = vpop.permute.xlu0 %370
    %v373 = vmul.f32 %v366, %v52
    %v374 = vmul.f32 %v371, %v53
    %v375 = vsel %vm69, %v373, 0.0
    %v376 = vrot.slane %v375, 4
    %v377 = vadd.f32 %v375, %v376
    %v378 = vrot.slane %v377, 2
    %v379 = vadd.f32 %v377, %v378
    %v380 = vrot.slane %v379, 1
    %v381 = vadd.f32 %v379, %v380
    %v382 = vsel %vm69, %v374, 0.0
    %v383 = vrot.slane %v382, 4
    %v384 = vadd.f32 %v382, %v383
    %v385 = vrot.slane %v384, 2
    %v386 = vadd.f32 %v384, %v385
    %v387 = vrot.slane %v386, 1
    %v388 = vadd.f32 %v386, %v387
    %v391 = vsel %vm303, %v388, %v381
    %v392 = vsel %vm69, %v391, 0
    %394 = vmatprep.subr.mxu0 0.0
    %395 = vmatpush1.msra.mxu0 %v65
    %396 = vmatprep.subr.mxu0 0.0
    %397 = vmatpush1.msra.mxu0 %v66
    %398 = vmatprep.subr.mxu0 0.0
    %399 = vmatpush1.msra.mxu0 %v67
    %400 = vmatprep.subr.mxu0 0.0
    %401 = vmatpush1.msra.mxu0 %v68
    %402 = vmatprep.subr.mxu0 0.0
    %403 = vmatpush1.msra.mxu0 0.0
    %404 = vmatprep.subr.mxu0 0.0
    %405 = vmatpush1.msra.mxu0 0.0
    %406 = vmatprep.subr.mxu0 0.0
    %407 = vmatpush1.msra.mxu0 0.0
    %408 = vmatprep.subr.mxu0 0.0
    %409 = vmatpush1.msra.mxu0 0.0
    %410 = vmatprep.subr.mxu0 0.0
    %411 = vmatpush1.msra.mxu0 0.0
    %412 = vmatprep.subr.mxu0 0.0
    %413 = vmatpush1.msra.mxu0 0.0
    %414 = vmatprep.subr.mxu0 0.0
    %415 = vmatpush1.msra.mxu0 0.0
    %416 = vmatprep.subr.mxu0 0.0
    %417 = vmatpush1.msra.mxu0 0.0
    %418 = vmatprep.subr.mxu0 0.0
    %419 = vmatpush1.msra.mxu0 0.0
    %420 = vmatprep.subr.mxu0 0.0
    %421 = vmatpush1.msra.mxu0 0.0
    %422 = vmatprep.subr.mxu0 0.0
    %423 = vmatpush1.msra.mxu0 0.0
    %424 = vmatprep.subr.mxu0 0.0
    %425 = vmatpush1.msra.mxu0 0.0
    %426 = vmatprep.subr.mxu0 0.0
    %427 = vmatpush1.msra.mxu0 0.0
    %428 = vmatprep.subr.mxu0 0.0
    %429 = vmatpush1.msra.mxu0 0.0
    %430 = vmatprep.subr.mxu0 0.0
    %431 = vmatpush1.msra.mxu0 0.0
    %432 = vmatprep.subr.mxu0 0.0
    %433 = vmatpush1.msra.mxu0 0.0
    %434 = vmatprep.subr.mxu0 0.0
    %435 = vmatpush1.msra.mxu0 0.0
    %436 = vmatprep.subr.mxu0 0.0
    %437 = vmatpush1.msra.mxu0 0.0
    %438 = vmatprep.subr.mxu0 0.0
    %439 = vmatpush1.msra.mxu0 0.0
    %440 = vmatprep.subr.mxu0 0.0
    %441 = vmatpush1.msra.mxu0 0.0
    %442 = vmatprep.subr.mxu0 0.0
    %443 = vmatpush1.msra.mxu0 0.0
    %444 = vmatprep.subr.mxu0 0.0
    %445 = vmatpush1.msra.mxu0 0.0
    %446 = vmatprep.subr.mxu0 0.0
    %447 = vmatpush1.msra.mxu0 0.0
    %448 = vmatprep.subr.mxu0 0.0
    %449 = vmatpush1.msra.mxu0 0.0
    %450 = vmatprep.subr.mxu0 0.0
    %451 = vmatpush1.msra.mxu0 0.0
    %452 = vmatprep.subr.mxu0 0.0
    %453 = vmatpush1.msra.mxu0 0.0
    %454 = vmatprep.subr.mxu0 0.0
    %455 = vmatpush1.msra.mxu0 0.0
    %456 = vmatprep.subr.mxu0 0.0
    %457 = vmatpush1.msra.mxu0 0.0
    %458 = vmatprep.mubr.f32.mxu0 0.0
    %459 = vmatmul.mubr.f32.gmra.mrb[0].mxu0 %v392
    %v460 = vpop.f32.mrb[0].mxu0
    %v461 = vadd.f32 0.0, %v460
    %v462 = vpop.f32.mrb[0].mxu0
    %463 = vdwg.mxu0
    %vm464 = vcmask 9216
    %v465 = vsel %vm464, %v461, -inf
    %466 = vmax.xlane.f32.xlu0 %v465
    %v467 = vpop.xlane.xlu0 %466
    %v468 = vsub.f32 %v461, %v467
    %v469 = vmul.f32 %v468, 1.442695
    %v470 = vpow.pop %v469
    %v471 = vsel %vm464, %v470, 0.0
    %472 = vadd.xlane.f32.xlu0 %v471
    %v473 = vpop.xlane.xlu0 %472
    %v474 = vrcp.pop %v473
    %v475 = vmul.f32 %v470, %v474
    %476 = vst.msk [vmem:[#allocation7] sm:$0x3] %vm464, %v475
    // Predicated region
    $region34: #{tpu_custom_call.1} parent=1 // pred_check
      _
    $region35: #{tpu_custom_call.1} parent=1 // pred_check_branch
      %478 = sbr.rel (0) target = $region37
    $region36: #{tpu_custom_call.1} parent=1 // pred_region
      %s480 = ssub.s32 32, 32
      %481 = vsyncadd [#allocation4], %s480
      %s483 = sshll.u32 [#allocation7], 4
      %s484 = int_to_ptr.vmem [resolvable:$true] %s483
      %486 = dma.vmem_to_hbm [thread:$0]  %s484, 32, %s6, [#allocation4]
    $region37: #{tpu_custom_call.1} parent=1 // pred_fallthru
      _
    // Predicated region
    $region38: #{tpu_custom_call.1} parent=1 // pred_check
      _
    $region39: #{tpu_custom_call.1} parent=1 // pred_check_branch
      %488 = sbr.rel (0) target = $region41
    $region40: #{tpu_custom_call.1} parent=1 // pred_region
      %489 = dma.done [#allocation4], 32
    $region41: #{tpu_custom_call.1} parent=1 // pred_fallthru
      _
    %490 = vsyncpa [#allocation3], 1
    %491 = vsyncpa [#allocation6], 1
    %492 = vsyncpa [#allocation4], 1

</llo_original>
